<compile_context>
chip_gen: v7x
topology: tpu7x:2x2x1
jax: 0.10.0
libtpu: 0.0.40
codegen_flags: <defaults>
</compile_context>

<pallas_src>
import functools

import jax
import jax.numpy as jnp
from jax.experimental import pallas as pl
from jax.experimental.pallas import tpu as pltpu


# ----------------------------------------------------------------------------
# Kernels
# ----------------------------------------------------------------------------

def _se_kernel_fused(x_ref, w1_ref, b1_ref, w2_ref, b2_ref, o_ref):
    # Single fused pass: 1 read + 1 write of x per tile.
    # x_ref/o_ref: (bt, C, HW)  (NCHW kept; HW on lanes)
    # w1_ref: (C, SE)   b1_ref: (1, SE)
    # w2_ref: (SE, C)   b2_ref: (1, C)
    mean = jnp.mean(x_ref[...].astype(jnp.float32), axis=2)                 # (bt, C)

    s = jnp.dot(mean, w1_ref[...], preferred_element_type=jnp.float32)
    s = s + b1_ref[...]
    s = s * jax.nn.sigmoid(s)                                               # SiLU

    e = jnp.dot(s, w2_ref[...], preferred_element_type=jnp.float32)
    e = e + b2_ref[...]
    gate = jax.nn.sigmoid(e).astype(o_ref.dtype)                            # (bt, C)

    o_ref[...] = x_ref[...] * gate[:, :, None]


def _se_kernel_ctiled(x_ref, w1_ref, b1_ref, w2_ref, b2_ref, o_ref, s_ref):
    # Two-phase, channel-tiled path for images too large for a single block.
    # grid = (B, 2, n_ct);  phase 0: accumulate squeeze-FC input over channel
    # tiles; phase 1: recompute the gate slice per tile and apply it (2R + 1W).
    # x_ref/o_ref: (1, 1, ct, HW)
    # w1_ref: (1, ct, SE)  b1_ref: (1, SE)
    # w2_ref: (1, SE, ct)  b2_ref: (1, 1, ct)
    # s_ref (scratch): (1, SE) f32 — squeeze-FC accumulator, then SiLU(s).
    p = pl.program_id(1)
    c = pl.program_id(2)
    n_ct = pl.num_programs(2)

    @pl.when(jnp.logical_and(p == 0, c == 0))
    def _init():
        s_ref[...] = jnp.zeros_like(s_ref)

    @pl.when(p == 0)
    def _accumulate():
        # Exact per-channel spatial mean (HW is not tiled), f32 accumulation.
        mean = jnp.mean(x_ref[0].astype(jnp.float32), axis=2)               # (1, ct)
        s_ref[...] += jnp.dot(mean, w1_ref[0], preferred_element_type=jnp.float32)

    @pl.when(jnp.logical_and(p == 0, c == n_ct - 1))
    def _squeeze_activate():
        s = s_ref[...] + b1_ref[...]
        s_ref[...] = s * jax.nn.sigmoid(s)                                  # SiLU

    @pl.when(p == 1)
    def _apply_gate():
        e = jnp.dot(s_ref[...], w2_ref[0], preferred_element_type=jnp.float32)
        e = e + b2_ref[0]
        gate = jax.nn.sigmoid(e).astype(o_ref.dtype)                        # (1, ct)
        o_ref[0] = x_ref[0] * gate[:, :, None]


# ----------------------------------------------------------------------------
# Tiling / VMEM heuristics
# ----------------------------------------------------------------------------

@functools.lru_cache(maxsize=1)
def _vmem_limit_bytes():
    # Generation-aware scoped-VMEM limit: ~48 MiB on v7x (64 MiB physical),
    # up to 96 MiB on v5e/v6e (128 MiB physical), never below 32 MiB.
    cap = 64 * 1024 * 1024
    try:
        info = pltpu.get_tpu_info()
        cap = int(getattr(info, "vmem_capacity_bytes", cap))
    except Exception:
        pass
    return int(min(max(cap * 3 // 4, 32 * 1024 * 1024), 96 * 1024 * 1024))


def _target_block_bytes(vmem_limit):
    # Double-buffered in + out ~= 4x block, plus resident weights -> block
    # <= limit/6, clamped to the 4-8 MiB sweet spot of the HBM roofline.
    return int(min(max(vmem_limit // 6, 4 * 1024 * 1024), 8 * 1024 * 1024))


def _pick_bt(batch, channels, per_image_bytes, target_block_bytes):
    cap = min(
        batch,
        max(1, target_block_bytes // max(per_image_bytes, 1)),
        max(1, 8192 // max(channels, 1)),             # keep (bt, C) f32 intermediates small
        batch // 2 if batch >= 2 else 1,              # >= 2 grid steps keeps both v7x TCs fed
    )
    divisors = [d for d in range(1, cap + 1) if batch % d == 0]
    mult8 = [d for d in divisors if d % 8 == 0]
    return (mult8 or divisors)[-1]


def _pick_ct(channels, per_channel_bytes, target_block_bytes):
    cap = min(channels, max(1, target_block_bytes // max(per_channel_bytes, 1)))
    divisors = [d for d in range(1, cap + 1) if channels % d == 0]
    mult8 = [d for d in divisors if d % 8 == 0]
    return (mult8 or divisors)[-1]


# ----------------------------------------------------------------------------
# Wrapper
# ----------------------------------------------------------------------------

@functools.partial(jax.jit, static_argnames=("max_block_bytes",))
def se_forward(x, w_reduce, b_reduce, w_expand, b_expand, *, max_block_bytes=None):
    """x: (B, C, H, W) NCHW; w_reduce: (SE, C); w_expand: (C, SE) 1x1-conv weights."""
    B, C, H, W = x.shape
    se_dim = w_reduce.shape[0]
    HW = H * W
    dsize = jnp.dtype(x.dtype).itemsize

    vmem_limit = _vmem_limit_bytes()
    target = int(max_block_bytes) if max_block_bytes is not None else _target_block_bytes(vmem_limit)

    # Free reshape — NO transpose, NCHW layout is kept end to end (HW on lanes).
    x_flat = x.reshape(B, C, HW)
    per_image_bytes = C * HW * dsize

    if per_image_bytes <= target:
        # ---------------- fused single-pass path: 1R + 1W of x ----------------
        bt = _pick_bt(B, C, per_image_bytes, target)
        grid = (B // bt,)

        w1 = w_reduce.T                    # (C, SE)
        b1 = b_reduce.reshape(1, se_dim)   # (1, SE)
        w2 = w_expand.T                    # (SE, C)
        b2 = b_expand.reshape(1, C)        # (1, C)

        out_flat = pl.pallas_call(
            _se_kernel_fused,
            out_shape=jax.ShapeDtypeStruct((B, C, HW), x.dtype),
            grid_spec=pltpu.PrefetchScalarGridSpec(
                num_scalar_prefetch=0,
                grid=grid,
                in_specs=[
                    pl.BlockSpec((bt, C, HW), lambda b: (b, 0, 0)),   # x tile
                    pl.BlockSpec((C, se_dim), lambda b: (0, 0)),      # w_reduce^T (resident)
                    pl.BlockSpec((1, se_dim), lambda b: (0, 0)),      # b_reduce
                    pl.BlockSpec((se_dim, C), lambda b: (0, 0)),      # w_expand^T (resident)
                    pl.BlockSpec((1, C), lambda b: (0, 0)),           # b_expand
                ],
                out_specs=pl.BlockSpec((bt, C, HW), lambda b: (b, 0, 0)),
            ),
            compiler_params=pltpu.CompilerParams(
                dimension_semantics=("parallel",),
                vmem_limit_bytes=vmem_limit,
            ),
        )(x_flat, w1, b1, w2, b2)
        return out_flat.reshape(B, C, H, W)

    # ------------- channel-tiled two-phase path (large images): 2R + 1W -------------
    ct = _pick_ct(C, HW * dsize, target)
    n_ct = C // ct

    x4 = x_flat.reshape(B, n_ct, ct, HW)
    w1 = w_reduce.T.reshape(n_ct, ct, se_dim)                          # (n_ct, ct, SE)
    b1 = b_reduce.reshape(1, se_dim)                                   # (1, SE)
    w2 = w_expand.T.reshape(se_dim, n_ct, ct).transpose(1, 0, 2)       # (n_ct, SE, ct)
    b2 = b_expand.reshape(n_ct, 1, ct)                                 # (n_ct, 1, ct)

    grid = (B, 2, n_ct)
    out4 = pl.pallas_call(
        _se_kernel_ctiled,
        out_shape=jax.ShapeDtypeStruct((B, n_ct, ct, HW), x.dtype),
        grid_spec=pltpu.PrefetchScalarGridSpec(
            num_scalar_prefetch=0,
            grid=grid,
            in_specs=[
                # x tile is read in both phases.
                pl.BlockSpec((1, 1, ct, HW), lambda b, p, c: (b, c, 0, 0)),
                # w1 only needed in phase 0; pinned to block 0 in phase 1.
                pl.BlockSpec((1, ct, se_dim), lambda b, p, c: (c * (1 - p), 0, 0)),
                pl.BlockSpec((1, se_dim), lambda b, p, c: (0, 0)),
                # w2/b2 only needed in phase 1; pinned to block 0 in phase 0.
                pl.BlockSpec((1, se_dim, ct), lambda b, p, c: (c * p, 0, 0)),
                pl.BlockSpec((1, 1, ct), lambda b, p, c: (c * p, 0, 0)),
            ],
            # Output block index is held constant during phase 0 (nothing is
            # written / flushed) and sweeps the channel tiles in phase 1.
            out_specs=pl.BlockSpec((1, 1, ct, HW), lambda b, p, c: (b, c * p, 0, 0)),
            scratch_shapes=[pltpu.VMEM((1, se_dim), jnp.float32)],
        ),
        compiler_params=pltpu.CompilerParams(
            dimension_semantics=("parallel", "arbitrary", "arbitrary"),
            vmem_limit_bytes=vmem_limit,
        ),
    )(x4, w1, b1, w2, b2)
    return out4.reshape(B, C, H, W)


# ----------------------------------------------------------------------------
# Reference & tests
# ----------------------------------------------------------------------------

def se_reference(x, w_reduce, b_reduce, w_expand, b_expand):
    """Pure-JAX reference matching the PyTorch forward."""
    mean = jnp.mean(x, axis=(2, 3), keepdims=True)                               # (B,C,1,1)
    s = jnp.einsum('oc,bcij->boij', w_reduce, mean) + b_reduce[None, :, None, None]
    s = s * jax.nn.sigmoid(s)                                                     # SiLU
    e = jnp.einsum('oc,bcij->boij', w_expand, s) + b_expand[None, :, None, None]
    return jax.nn.sigmoid(e) * x


def _run_case(key, B, C, H, W, SE_FILTERS, max_block_bytes=None):
    kx, k1, k2, k3, k4 = jax.random.split(key, 5)
    x = jax.random.normal(kx, (B, C, H, W), dtype=jnp.float32)
    w_reduce = 0.1 * jax.random.normal(k1, (SE_FILTERS, C), dtype=jnp.float32)
    b_reduce = 0.05 * jax.random.normal(k2, (SE_FILTERS,), dtype=jnp.float32)
    w_expand = 0.1 * jax.random.normal(k3, (C, SE_FILTERS), dtype=jnp.float32)
    b_expand = 0.05 * jax.random.normal(k4, (C,), dtype=jnp.float32)

    out = jax.block_until_ready(
        se_forward(x, w_reduce, b_reduce, w_expand, b_expand,
                   max_block_bytes=max_block_bytes))
    ref = se_reference(x, w_reduce, b_reduce, w_expand, b_expand)
    assert out.shape == (B, C, H, W)
    assert jnp.allclose(out, ref, atol=1e-5, rtol=1e-5), "mismatch vs reference"


if __name__ == "__main__":
    key = jax.random.PRNGKey(0)
    k0, k1, k2 = jax.random.split(key, 3)

    # Fused single-pass path, tiny channels.
    _run_case(k0, B=2, C=8, H=16, W=16, SE_FILTERS=4)
    # Fused single-pass path, SE-stage-like channel count.
    _run_case(k1, B=2, C=128, H=4, W=4, SE_FILTERS=8)
    # Channel-tiled two-phase path, forced via a tiny block cap (exercises the
    # large-feature-map / v7x-VMEM-safe code path at small shapes).
    _run_case(k2, B=2, C=32, H=8, W=8, SE_FILTERS=8, max_block_bytes=2048)

    print("KERNEL_OK")
</pallas_src>

<mosaic_0001>
module attributes {stable_mosaic.version = 11 : i64} {
  func.func @_se_kernel_fused(%arg0: i32, %arg1: memref<1x8x256xf32, #tpu.memory_space<vmem>>, %arg2: memref<8x4xf32, #tpu.memory_space<vmem>>, %arg3: memref<1x4xf32, #tpu.memory_space<vmem>>, %arg4: memref<4x8xf32, #tpu.memory_space<vmem>>, %arg5: memref<1x8xf32, #tpu.memory_space<vmem>>, %arg6: memref<1x8x256xf32, #tpu.memory_space<vmem>>) attributes {dimension_semantics = [#tpu.dimension_semantics<parallel>], iteration_bounds = array<i64: 2>, scalar_prefetch = 0 : i64, scratch_operands = 0 : i64, tpu.core_type = #tpu.core_type<tc>, window_params = [{transform_indices = @transform_0, window_bounds = array<i64: 1, 8, 256>}, {pipeline_mode = #tpu.pipeline_mode<synchronous>, transform_indices = @transform_1, window_bounds = array<i64: 8, 4>}, {pipeline_mode = #tpu.pipeline_mode<synchronous>, transform_indices = @transform_2, window_bounds = array<i64: 1, 4>}, {pipeline_mode = #tpu.pipeline_mode<synchronous>, transform_indices = @transform_3, window_bounds = array<i64: 4, 8>}, {pipeline_mode = #tpu.pipeline_mode<synchronous>, transform_indices = @transform_4, window_bounds = array<i64: 1, 8>}, {transform_indices = @transform_5, window_bounds = array<i64: 1, 8, 256>}]} {
    %c0 = arith.constant 0 : index
    %c0_0 = arith.constant 0 : index
    %c0_1 = arith.constant 0 : index
    %0 = vector.load %arg1[%c0, %c0_0, %c0_1] : memref<1x8x256xf32, #tpu.memory_space<vmem>>, vector<1x8x256xf32>
    %cst = arith.constant dense<0.000000e+00> : vector<1x8xf32>
    %1 = vector.multi_reduction <add>, %0, %cst [2] : vector<1x8x256xf32> to vector<1x8xf32>
    %cst_2 = arith.constant 2.560000e+02 : f32
    %2 = vector.broadcast %cst_2 : f32 to vector<1x8xf32>
    %3 = arith.divf %1, %2 : vector<1x8xf32>
    %c0_3 = arith.constant 0 : index
    %c0_4 = arith.constant 0 : index
    %4 = vector.load %arg2[%c0_3, %c0_4] : memref<8x4xf32, #tpu.memory_space<vmem>>, vector<8x4xf32>
    %cst_5 = arith.constant dense<0.000000e+00> : vector<1x4xf32>
    %5 = tpu.matmul %3, %4, %cst_5 {dimension_numbers = #tpu.dot_dimension_numbers<[1], [0], [0], [1], [0, 0, 1, 1], [], []>} : vector<1x8xf32>, vector<8x4xf32>, vector<1x4xf32> -> vector<1x4xf32>
    %c0_6 = arith.constant 0 : index
    %c0_7 = arith.constant 0 : index
    %6 = vector.load %arg3[%c0_6, %c0_7] : memref<1x4xf32, #tpu.memory_space<vmem>>, vector<1x4xf32>
    %7 = arith.addf %5, %6 : vector<1x4xf32>
    %8 = arith.negf %7 : vector<1x4xf32>
    %9 = math.exp %8 : vector<1x4xf32>
    %cst_8 = arith.constant 1.000000e+00 : f32
    %10 = vector.broadcast %cst_8 : f32 to vector<1x4xf32>
    %11 = arith.addf %10, %9 : vector<1x4xf32>
    %12 = arith.divf %10, %11 : vector<1x4xf32>
    %13 = arith.mulf %7, %12 : vector<1x4xf32>
    %c0_9 = arith.constant 0 : index
    %c0_10 = arith.constant 0 : index
    %14 = vector.load %arg4[%c0_9, %c0_10] : memref<4x8xf32, #tpu.memory_space<vmem>>, vector<4x8xf32>
    %cst_11 = arith.constant dense<0.000000e+00> : vector<1x8xf32>
    %15 = tpu.matmul %13, %14, %cst_11 {dimension_numbers = #tpu.dot_dimension_numbers<[1], [0], [0], [1], [0, 0, 1, 1], [], []>} : vector<1x4xf32>, vector<4x8xf32>, vector<1x8xf32> -> vector<1x8xf32>
    %c0_12 = arith.constant 0 : index
    %c0_13 = arith.constant 0 : index
    %16 = vector.load %arg5[%c0_12, %c0_13] : memref<1x8xf32, #tpu.memory_space<vmem>>, vector<1x8xf32>
    %17 = arith.addf %15, %16 : vector<1x8xf32>
    %18 = arith.negf %17 : vector<1x8xf32>
    %19 = math.exp %18 : vector<1x8xf32>
    %cst_14 = arith.constant 1.000000e+00 : f32
    %20 = vector.broadcast %cst_14 : f32 to vector<1x8xf32>
    %21 = arith.addf %20, %19 : vector<1x8xf32>
    %22 = arith.divf %20, %21 : vector<1x8xf32>
    %c0_15 = arith.constant 0 : index
    %c0_16 = arith.constant 0 : index
    %c0_17 = arith.constant 0 : index
    %23 = vector.load %arg1[%c0_15, %c0_16, %c0_17] : memref<1x8x256xf32, #tpu.memory_space<vmem>>, vector<1x8x256xf32>
    %24 = vector.shape_cast %22 : vector<1x8xf32> to vector<1x8x1xf32>
    %25 = vector.broadcast %24 : vector<1x8x1xf32> to vector<1x8x256xf32>
    %26 = arith.mulf %23, %25 : vector<1x8x256xf32>
    %c0_18 = arith.constant 0 : index
    %c0_19 = arith.constant 0 : index
    %c0_20 = arith.constant 0 : index
    %27 = vector.load %arg6[%c0_18, %c0_19, %c0_20] : memref<1x8x256xf32, #tpu.memory_space<vmem>>, vector<1x8x256xf32>
    tpu.vector_store %arg6[%c0_18, %c0_19, %c0_20], %26 {strides = array<i32>} : memref<1x8x256xf32, #tpu.memory_space<vmem>>, vector<1x8x256xf32>,
    return
  }
  func.func @transform_0(%arg0: i32) -> (i32, i32, i32) {
    %c0_i32 = arith.constant 0 : i32
    %c0_i32_0 = arith.constant 0 : i32
    %c0_i32_1 = arith.constant 0 : i32
    return %arg0, %c0_i32, %c0_i32_0 : i32, i32, i32
  }
  func.func @transform_1(%arg0: i32) -> (i32, i32) {
    %c0_i32 = arith.constant 0 : i32
    %c0_i32_0 = arith.constant 0 : i32
    %c0_i32_1 = arith.constant 0 : i32
    return %c0_i32, %c0_i32_0 : i32, i32
  }
  func.func @transform_2(%arg0: i32) -> (i32, i32) {
    %c0_i32 = arith.constant 0 : i32
    %c0_i32_0 = arith.constant 0 : i32
    %c0_i32_1 = arith.constant 0 : i32
    return %c0_i32, %c0_i32_0 : i32, i32
  }
  func.func @transform_3(%arg0: i32) -> (i32, i32) {
    %c0_i32 = arith.constant 0 : i32
    %c0_i32_0 = arith.constant 0 : i32
    %c0_i32_1 = arith.constant 0 : i32
    return %c0_i32, %c0_i32_0 : i32, i32
  }
  func.func @transform_4(%arg0: i32) -> (i32, i32) {
    %c0_i32 = arith.constant 0 : i32
    %c0_i32_0 = arith.constant 0 : i32
    %c0_i32_1 = arith.constant 0 : i32
    return %c0_i32, %c0_i32_0 : i32, i32
  }
  func.func @transform_5(%arg0: i32) -> (i32, i32, i32) {
    %c0_i32 = arith.constant 0 : i32
    %c0_i32_0 = arith.constant 0 : i32
    %c0_i32_1 = arith.constant 0 : i32
    return %arg0, %c0_i32, %c0_i32_0 : i32, i32, i32
  }
}

</mosaic_0001>

<llo_original>
// kernel: se_forward.1
$region0: #{se_forward.1}
  #allocation0 [shape = 'u32[]', space=smem, size = 0x4, offset = 0x4, fixed_abs, tag = 'smem constant byte address 0x4 - core index']
  #allocation1 [shape = 'u32[144,128]{1,0:T(1,128)}', space=vmem, size = 0x12000, scoped, tag = 'internal scratch']
  %s0 = inlined_call_operand.vmem [shape: f32[2,8,256], index: 0, kind: input, shape index: {}]
  %s1 = inlined_call_operand.vmem [shape: f32[8,4], index: 1, kind: input, shape index: {}]
  %s2 = inlined_call_operand.vmem [shape: f32[1,4], index: 2, kind: input, shape index: {}]
  %s3 = inlined_call_operand.vmem [shape: f32[4,8], index: 3, kind: input, shape index: {}]
  %s4 = inlined_call_operand.vmem [shape: f32[1,8], index: 4, kind: input, shape index: {}]
  %s5 = inlined_call_operand.vmem [shape: f32[2,8,256], index: 5, kind: output, shape index: {}]
  %s6 = sld [smem:[#allocation0]]
  $region53: #{se_forward.1} parent=0
    _
  %s8 = ssub.s32 1, %s6
  %s9 = scalar_select 0, %s8, %s6
  loop: start=0, step=1, limit=4
  $region2: #{se_forward.1} parent=0 // loop_pre_header
    _
  $region3: #{se_forward.1} parent=0 // loop_header
    %s11 = sphi 0, %s15
    %p12 = scmp.ge.s32.totalorder %s11, 4
    %s21 = sphi 0, %s23
    %s24 = sphi 0, %s21
    %s25 = sphi 0, %s24
    %s41 = sphi 0, %s25
    %s45 = sphi 0, %s45
    %s47 = sphi 0, %s45
    %s48 = sphi 0, %s47
    %s62 = sphi 0, %s48
    %s66 = sphi 0, %s66
    %s68 = sphi 0, %s66
    %s69 = sphi 0, %s68
    %s83 = sphi 0, %s69
    %s87 = sphi 0, %s87
    %s89 = sphi 0, %s87
    %s90 = sphi 0, %s89
    %s104 = sphi 0, %s90
    %s108 = sphi 0, %s108
    %s110 = sphi 0, %s108
    %s111 = sphi 0, %s110
    %s125 = sphi 0, %s111
    %s131 = sphi 0, %s133
    %s134 = sphi 0, %s131
    %s135 = sphi 0, %s134
    %s151 = sphi 0, %s135
  $region4: #{se_forward.1} parent=0 // loop_header_branch
    %14 = sbr.rel (%p12) target = $region8
  $region5: #{se_forward.1} parent=0 // loop_body
    %s16 = ssub.s32 %s11, 1
    %s17 = ssub.s32 %s11, 2
    %s18 = sadd.s32 %s11, 1
    %s19 = ssub.s32 %s11, %s18
    %p20 = scmp.eq.s32.totalorder %s19, 0
    %s22 = sadd.s32 %s21, 1
    %s23 = scalar_select %p20, %s21, %s22
    %p26 = pneg %p20
    %p27 = scmp.eq.s32.totalorder %s11, 1
    %p28 = por %p26, %p27
    %p29 = scmp.ne.s32.totalorder %s21, %s24
    %p30 = scmp.eq.s32.totalorder %s11, 0
    %p31 = por %p29, %p30
    %p32 = scmp.ne.s32.totalorder %s21, %s24
    %p33 = scmp.eq.s32.totalorder %s16, 1
    %p34 = por %p32, %p33
    %p35 = scmp.ne.s32.totalorder %s24, %s25
    %p36 = scmp.eq.s32.totalorder %s16, 0
    %p37 = por %p35, %p36
    %p38 = scmp.ne.s32.totalorder %s24, %s25
    %p39 = scmp.eq.s32.totalorder %s17, 1
    %p40 = por %p38, %p39
    %p42 = scmp.ne.s32.totalorder %s25, %s41
    %p43 = scmp.eq.s32.totalorder %s17, 0
    %p44 = por %p42, %p43
    %s46 = sadd.s32 %s45, 1
    %p49 = scmp.eq.s32.totalorder %s11, 1
    %p50 = scmp.ne.s32.totalorder %s45, %s47
    %p51 = scmp.eq.s32.totalorder %s11, 0
    %p52 = por %p50, %p51
    %p53 = scmp.ne.s32.totalorder %s45, %s47
    %p54 = scmp.eq.s32.totalorder %s16, 1
    %p55 = por %p53, %p54
    %p56 = scmp.ne.s32.totalorder %s47, %s48
    %p57 = scmp.eq.s32.totalorder %s16, 0
    %p58 = por %p56, %p57
    %p59 = scmp.ne.s32.totalorder %s47, %s48
    %p60 = scmp.eq.s32.totalorder %s17, 1
    %p61 = por %p59, %p60
    %p63 = scmp.ne.s32.totalorder %s48, %s62
    %p64 = scmp.eq.s32.totalorder %s17, 0
    %p65 = por %p63, %p64
    %s67 = sadd.s32 %s66, 1
    %p70 = scmp.eq.s32.totalorder %s11, 1
    %p71 = scmp.ne.s32.totalorder %s66, %s68
    %p72 = scmp.eq.s32.totalorder %s11, 0
    %p73 = por %p71, %p72
    %p74 = scmp.ne.s32.totalorder %s66, %s68
    %p75 = scmp.eq.s32.totalorder %s16, 1
    %p76 = por %p74, %p75
    %p77 = scmp.ne.s32.totalorder %s68, %s69
    %p78 = scmp.eq.s32.totalorder %s16, 0
    %p79 = por %p77, %p78
    %p80 = scmp.ne.s32.totalorder %s68, %s69
    %p81 = scmp.eq.s32.totalorder %s17, 1
    %p82 = por %p80, %p81
    %p84 = scmp.ne.s32.totalorder %s69, %s83
    %p85 = scmp.eq.s32.totalorder %s17, 0
    %p86 = por %p84, %p85
    %s88 = sadd.s32 %s87, 1
    %p91 = scmp.eq.s32.totalorder %s11, 1
    %p92 = scmp.ne.s32.totalorder %s87, %s89
    %p93 = scmp.eq.s32.totalorder %s11, 0
    %p94 = por %p92, %p93
    %p95 = scmp.ne.s32.totalorder %s87, %s89
    %p96 = scmp.eq.s32.totalorder %s16, 1
    %p97 = por %p95, %p96
    %p98 = scmp.ne.s32.totalorder %s89, %s90
    %p99 = scmp.eq.s32.totalorder %s16, 0
    %p100 = por %p98, %p99
    %p101 = scmp.ne.s32.totalorder %s89, %s90
    %p102 = scmp.eq.s32.totalorder %s17, 1
    %p103 = por %p101, %p102
    %p105 = scmp.ne.s32.totalorder %s90, %s104
    %p106 = scmp.eq.s32.totalorder %s17, 0
    %p107 = por %p105, %p106
    %s109 = sadd.s32 %s108, 1
    %p112 = scmp.eq.s32.totalorder %s11, 1
    %p113 = scmp.ne.s32.totalorder %s108, %s110
    %p114 = scmp.eq.s32.totalorder %s11, 0
    %p115 = por %p113, %p114
    %p116 = scmp.ne.s32.totalorder %s108, %s110
    %p117 = scmp.eq.s32.totalorder %s16, 1
    %p118 = por %p116, %p117
    %p119 = scmp.ne.s32.totalorder %s110, %s111
    %p120 = scmp.eq.s32.totalorder %s16, 0
    %p121 = por %p119, %p120
    %p122 = scmp.ne.s32.totalorder %s110, %s111
    %p123 = scmp.eq.s32.totalorder %s17, 1
    %p124 = por %p122, %p123
    %p126 = scmp.ne.s32.totalorder %s111, %s125
    %p127 = scmp.eq.s32.totalorder %s17, 0
    %p128 = por %p126, %p127
    %s129 = ssub.s32 %s11, %s18
    %p130 = scmp.eq.s32.totalorder %s129, 0
    %s132 = sadd.s32 %s131, 1
    %s133 = scalar_select %p130, %s131, %s132
    %p136 = pneg %p130
    %p137 = scmp.eq.s32.totalorder %s11, 1
    %p138 = por %p136, %p137
    %p139 = scmp.ne.s32.totalorder %s131, %s134
    %p140 = scmp.eq.s32.totalorder %s11, 0
    %p141 = por %p139, %p140
    %p142 = scmp.ne.s32.totalorder %s131, %s134
    %p143 = scmp.eq.s32.totalorder %s16, 1
    %p144 = por %p142, %p143
    %p145 = scmp.ne.s32.totalorder %s134, %s135
    %p146 = scmp.eq.s32.totalorder %s16, 0
    %p147 = por %p145, %p146
    %p148 = scmp.ne.s32.totalorder %s134, %s135
    %p149 = scmp.eq.s32.totalorder %s17, 1
    %p150 = por %p148, %p149
    %p152 = scmp.ne.s32.totalorder %s135, %s151
    %p153 = scmp.eq.s32.totalorder %s17, 0
    %p154 = por %p152, %p153
    %p155 = scmp.le.s32.totalorder 1, %s11
    %p156 = scmp.lt.s32.totalorder %s11, 3
    %p157 = pnand %p155, %p156
    %p158 = pneg %p157
    // Predicated region
    $region9: #{se_forward.1} parent=5 // pred_check
      _
    $region10: #{se_forward.1} parent=5 // pred_check_branch
      %160 = sbr.rel (%p157) target = $region12
    $region11: #{se_forward.1} parent=5 // pred_region
      %s161 = ssub.s32 %s11, 1
      // Predicated region
      $region13: #{se_forward.1} parent=11 // pred_check
        %p162 = pneg %p58
      $region14: #{se_forward.1} parent=11 // pred_check_branch
        %164 = sbr.rel (%p162) target = $region16
      $region15: #{se_forward.1} parent=11 // pred_region
        _
      $region16: #{se_forward.1} parent=11 // pred_fallthru
        _
      // Predicated region
      $region17: #{se_forward.1} parent=11 // pred_check
        %p165 = pneg %p79
      $region18: #{se_forward.1} parent=11 // pred_check_branch
        %167 = sbr.rel (%p165) target = $region20
      $region19: #{se_forward.1} parent=11 // pred_region
        _
      $region20: #{se_forward.1} parent=11 // pred_fallthru
        _
      // Predicated region
      $region21: #{se_forward.1} parent=11 // pred_check
        %p168 = pneg %p100
      $region22: #{se_forward.1} parent=11 // pred_check_branch
        %170 = sbr.rel (%p168) target = $region24
      $region23: #{se_forward.1} parent=11 // pred_region
        _
      $region24: #{se_forward.1} parent=11 // pred_fallthru
        _
      // Predicated region
      $region25: #{se_forward.1} parent=11 // pred_check
        %p171 = pneg %p121
      $region26: #{se_forward.1} parent=11 // pred_check_branch
        %173 = sbr.rel (%p171) target = $region28
      $region27: #{se_forward.1} parent=11 // pred_region
        _
      $region28: #{se_forward.1} parent=11 // pred_fallthru
        _
    $region12: #{se_forward.1} parent=5 // pred_fallthru
      _
    %p174 = scmp.lt.s32.totalorder %s11, 2
    // Predicated region
    $region29: #{se_forward.1} parent=5 // pred_check
      %p175 = pneg %p174
    $region30: #{se_forward.1} parent=5 // pred_check_branch
      %177 = sbr.rel (%p175) target = $region32
    $region31: #{se_forward.1} parent=5 // pred_region
      // Predicated region
      $region33: #{se_forward.1} parent=31 // pred_check
        %p178 = pneg %p31
      $region34: #{se_forward.1} parent=31 // pred_check_branch
        %180 = sbr.rel (%p178) target = $region36
      $region35: #{se_forward.1} parent=31 // pred_region
        %p181 = scmp.lt.s32.totalorder %s11, 1
        %s182 = scalar_select %p181, %s11, 1
        %s183 = smul.addr %s182, 2
        %s184 = smul.addr %s183, 8
        %s185 = scalar_lea.vmem %s0, %s184
      $region36: #{se_forward.1} parent=31 // pred_fallthru
        _
    $region32: #{se_forward.1} parent=5 // pred_fallthru
      _
    %p186 = scmp.le.s32.totalorder 1, %s11
    %p187 = scmp.lt.s32.totalorder %s11, 3
    %p188 = pnand %p186, %p187
    %p189 = pneg %p188
    // Predicated region
    $region37: #{se_forward.1} parent=5 // pred_check
      _
    $region38: #{se_forward.1} parent=5 // pred_check_branch
      %191 = sbr.rel (%p188) target = $region40
    $region39: #{se_forward.1} parent=5 // pred_region
      %s192 = ssub.s32 %s11, 1
      %p193 = scmp.lt.s32.totalorder %s16, 1
      %s194 = scalar_select %p193, %s16, 1
      %s195 = smul.addr %s194, 2
      %s196 = smul.addr %s195, 8
      %s197 = scalar_lea.vmem %s0, %s196
      %p198 = pneg %p37
      %p199 = pneg %p34
      %p200 = pneg %p58
      %p201 = pneg %p55
      %p202 = pneg %p79
      %p203 = pneg %p76
      %p204 = pneg %p100
      %p205 = pneg %p97
      %p206 = pneg %p121
      %p207 = pneg %p118
      %p208 = pneg %p147
      %p209 = pneg %p144
      %p210 = scmp.lt.s32.totalorder %s16, 1
      %s211 = scalar_select %p210, %s16, 1
      %s212 = smul.addr %s211, 2
      %s213 = smul.addr %s212, 8
      %s214 = scalar_lea.vmem %s5, %s213
      %p215 = scmp.lt.s32.totalorder %s16, 1
      %s216 = scalar_select %p215, %s16, 1
      %s217 = smul.addr %s216, 2
      %s218 = smul.addr %s217, 8
      %s219 = scalar_lea.vmem %s0, %s218
      %p220 = scmp.lt.s32.totalorder %s16, 1
      %s221 = scalar_select %p220, %s16, 1
      %s222 = smul.addr %s221, 2
      %s223 = smul.addr %s222, 8
      %s224 = scalar_lea.vmem %s5, %s223
      %v225 = vld [vmem:[%s219] sm:$0xff]
      %v226 = vld [vmem:[%s219 + $0x8] sm:$0xff]
      %v227 = vadd.f32 %v225, %v226
      %228 = vadd.xlane.f32.xlu0 %v227
      %v229 = vpop.xlane.xlu0 %228
      %v230 = vrcp.pop 256.0
      %v231 = vmul.f32 %v229, %v230
      %v232 = vld [vmem:[%s1] sm:$0xff]
      %v233 = vld [vmem:[%s2] sm:$0x1]
      %v235 = vlaneseq
      %v236 = vand.u32 %v235, 127
      %v237 = vlaneseq
      %v238 = vshrl.u32 %v237, 7
      %v239 = vsub.s32 %v236, %v238
      %v240 = vrot.slane %v231, %v239
      %vm241 = vcmask 64512
      %v242 = vsel %vm241, %v240, 0
      %244 = vmatprep.subr.mxu0 0.0
      %245 = vmatpush1.msra.mxu0 %v232
      %246 = vmatprep.subr.mxu0 0.0
      %247 = vmatpush1.msra.mxu0 0.0
      %248 = vmatprep.subr.mxu0 0.0
      %249 = vmatpush1.msra.mxu0 0.0
      %250 = vmatprep.subr.mxu0 0.0
      %251 = vmatpush1.msra.mxu0 0.0
      %252 = vmatprep.subr.mxu0 0.0
      %253 = vmatpush1.msra.mxu0 0.0
      %254 = vmatprep.subr.mxu0 0.0
      %255 = vmatpush1.msra.mxu0 0.0
      %256 = vmatprep.subr.mxu0 0.0
      %257 = vmatpush1.msra.mxu0 0.0
      %258 = vmatprep.subr.mxu0 0.0
      %259 = vmatpush1.msra.mxu0 0.0
      %260 = vmatprep.subr.mxu0 0.0
      %261 = vmatpush1.msra.mxu0 0.0
      %262 = vmatprep.subr.mxu0 0.0
      %263 = vmatpush1.msra.mxu0 0.0
      %264 = vmatprep.subr.mxu0 0.0
      %265 = vmatpush1.msra.mxu0 0.0
      %266 = vmatprep.subr.mxu0 0.0
      %267 = vmatpush1.msra.mxu0 0.0
      %268 = vmatprep.subr.mxu0 0.0
      %269 = vmatpush1.msra.mxu0 0.0
      %270 = vmatprep.subr.mxu0 0.0
      %271 = vmatpush1.msra.mxu0 0.0
      %272 = vmatprep.subr.mxu0 0.0
      %273 = vmatpush1.msra.mxu0 0.0
      %274 = vmatprep.subr.mxu0 0.0
      %275 = vmatpush1.msra.mxu0 0.0
      %276 = vmatprep.subr.mxu0 0.0
      %277 = vmatpush1.msra.mxu0 0.0
      %278 = vmatprep.subr.mxu0 0.0
      %279 = vmatpush1.msra.mxu0 0.0
      %280 = vmatprep.subr.mxu0 0.0
      %281 = vmatpush1.msra.mxu0 0.0
      %282 = vmatprep.subr.mxu0 0.0
      %283 = vmatpush1.msra.mxu0 0.0
      %284 = vmatprep.subr.mxu0 0.0
      %285 = vmatpush1.msra.mxu0 0.0
      %286 = vmatprep.subr.mxu0 0.0
      %287 = vmatpush1.msra.mxu0 0.0
      %288 = vmatprep.subr.mxu0 0.0
      %289 = vmatpush1.msra.mxu0 0.0
      %290 = vmatprep.subr.mxu0 0.0
      %291 = vmatpush1.msra.mxu0 0.0
      %292 = vmatprep.subr.mxu0 0.0
      %293 = vmatpush1.msra.mxu0 0.0
      %294 = vmatprep.subr.mxu0 0.0
      %295 = vmatpush1.msra.mxu0 0.0
      %296 = vmatprep.subr.mxu0 0.0
      %297 = vmatpush1.msra.mxu0 0.0
      %298 = vmatprep.subr.mxu0 0.0
      %299 = vmatpush1.msra.mxu0 0.0
      %300 = vmatprep.subr.mxu0 0.0
      %301 = vmatpush1.msra.mxu0 0.0
      %302 = vmatprep.subr.mxu0 0.0
      %303 = vmatpush1.msra.mxu0 0.0
      %304 = vmatprep.subr.mxu0 0.0
      %305 = vmatpush1.msra.mxu0 0.0
      %306 = vmatprep.subr.mxu0 0.0
      %307 = vmatpush1.msra.mxu0 0.0
      %308 = vmatprep.mubr.f32.mxu0 0.0
      %309 = vmatmul.mubr.f32.gmra.mrb[0].mxu0 %v242
      %v310 = vpop.f32.mrb[0].mxu0
      %v311 = vadd.f32 %v233, %v310
      %v312 = vpop.f32.mrb[0].mxu0
      %313 = vdwg.mxu0
      %v314 = vxor.u32 %v311, 2147483648
      %v315 = vmul.f32 %v314, 1.442695
      %v316 = vpow.pop %v315
      %v317 = vadd.f32 %v316, 1.0
      %v318 = vrcp.pop %v317
      %v319 = vmul.f32 1.0, %v318
      %v320 = vmul.f32 %v311, %v319
      %v321 = vld [vmem:[%s3] sm:$0xf]
      %v322 = vld [vmem:[%s4] sm:$0x1]
      %vm323 = vcmask 31744
      %v325 = vsel %vm323, %v320, 0
      %vm327 = vcmask 1043456
      %v329 = vsel %vm327, %v321, 0
      %331 = vmatprep.subr.mxu0 0.0
      %332 = vmatpush1.msra.mxu0 %v329
      %333 = vmatprep.subr.mxu0 0.0
      %334 = vmatpush1.msra.mxu0 0.0
      %335 = vmatprep.subr.mxu0 0.0
      %336 = vmatpush1.msra.mxu0 0.0
      %337 = vmatprep.subr.mxu0 0.0
      %338 = vmatpush1.msra.mxu0 0.0
      %339 = vmatprep.subr.mxu0 0.0
      %340 = vmatpush1.msra.mxu0 0.0
      %341 = vmatprep.subr.mxu0 0.0
      %342 = vmatpush1.msra.mxu0 0.0
      %343 = vmatprep.subr.mxu0 0.0
      %344 = vmatpush1.msra.mxu0 0.0
      %345 = vmatprep.subr.mxu0 0.0
      %346 = vmatpush1.msra.mxu0 0.0
      %347 = vmatprep.subr.mxu0 0.0
      %348 = vmatpush1.msra.mxu0 0.0
      %349 = vmatprep.subr.mxu0 0.0
      %350 = vmatpush1.msra.mxu0 0.0
      %351 = vmatprep.subr.mxu0 0.0
      %352 = vmatpush1.msra.mxu0 0.0
      %353 = vmatprep.subr.mxu0 0.0
      %354 = vmatpush1.msra.mxu0 0.0
      %355 = vmatprep.subr.mxu0 0.0
      %356 = vmatpush1.msra.mxu0 0.0
      %357 = vmatprep.subr.mxu0 0.0
      %358 = vmatpush1.msra.mxu0 0.0
      %359 = vmatprep.subr.mxu0 0.0
      %360 = vmatpush1.msra.mxu0 0.0
      %361 = vmatprep.subr.mxu0 0.0
      %362 = vmatpush1.msra.mxu0 0.0
      %363 = vmatprep.subr.mxu0 0.0
      %364 = vmatpush1.msra.mxu0 0.0
      %365 = vmatprep.subr.mxu0 0.0
      %366 = vmatpush1.msra.mxu0 0.0
      %367 = vmatprep.subr.mxu0 0.0
      %368 = vmatpush1.msra.mxu0 0.0
      %369 = vmatprep.subr.mxu0 0.0
      %370 = vmatpush1.msra.mxu0 0.0
      %371 = vmatprep.subr.mxu0 0.0
      %372 = vmatpush1.msra.mxu0 0.0
      %373 = vmatprep.subr.mxu0 0.0
      %374 = vmatpush1.msra.mxu0 0.0
      %375 = vmatprep.subr.mxu0 0.0
      %376 = vmatpush1.msra.mxu0 0.0
      %377 = vmatprep.subr.mxu0 0.0
      %378 = vmatpush1.msra.mxu0 0.0
      %379 = vmatprep.subr.mxu0 0.0
      %380 = vmatpush1.msra.mxu0 0.0
      %381 = vmatprep.subr.mxu0 0.0
      %382 = vmatpush1.msra.mxu0 0.0
      %383 = vmatprep.subr.mxu0 0.0
      %384 = vmatpush1.msra.mxu0 0.0
      %385 = vmatprep.subr.mxu0 0.0
      %386 = vmatpush1.msra.mxu0 0.0
      %387 = vmatprep.subr.mxu0 0.0
      %388 = vmatpush1.msra.mxu0 0.0
      %389 = vmatprep.subr.mxu0 0.0
      %390 = vmatpush1.msra.mxu0 0.0
      %391 = vmatprep.subr.mxu0 0.0
      %392 = vmatpush1.msra.mxu0 0.0
      %393 = vmatprep.subr.mxu0 0.0
      %394 = vmatpush1.msra.mxu0 0.0
      %395 = vmatprep.mubr.f32.mxu0 0.0
      %396 = vmatmul.mubr.f32.gmra.mrb[0].mxu0 %v325
      %v397 = vpop.f32.mrb[0].mxu0
      %v398 = vadd.f32 %v322, %v397
      %v399 = vpop.f32.mrb[0].mxu0
      %400 = vdwg.mxu0
      %v401 = vxor.u32 %v398, 2147483648
      %v402 = vmul.f32 %v401, 1.442695
      %v403 = vpow.pop %v402
      %v404 = vadd.f32 %v403, 1.0
      %v405 = vrcp.pop %v404
      %v406 = vmul.f32 1.0, %v405
      %v407 = vlaneseq
      %v408 = vshrl.u32 %v407, 7
      %v409 = vsub.s32 0, %v408
      %v410 = vrot.slane %v406, %v409
      %412 = vbcast.lane.b32.xlu0 %v410, 256
      %v413 = vpop.permute.xlu0 %412
      %v414 = vmul.f32 %v225, %v413
      %v415 = vmul.f32 %v226, %v413
      %416 = vst [vmem:[%s224] sm:$0xff] %v414
      %417 = vst [vmem:[%s224 + $0x8] sm:$0xff] %v415
      %p418 = scmp.lt.s32.totalorder %s16, 1
      %s419 = scalar_select %p418, %s16, 1
      %s420 = smul.addr %s419, 2
      %s421 = smul.addr %s420, 8
      %s422 = scalar_lea.vmem %s5, %s421
      // Predicated region
      $region41: #{se_forward.1} parent=39 // pred_check
        %p423 = pneg %p144
      $region42: #{se_forward.1} parent=39 // pred_check_branch
        %425 = sbr.rel (%p423) target = $region44
      $region43: #{se_forward.1} parent=39 // pred_region
        _
      $region44: #{se_forward.1} parent=39 // pred_fallthru
        _
    $region40: #{se_forward.1} parent=5 // pred_fallthru
      _
    %p426 = scmp.le.s32.totalorder 2, %s11
    // Predicated region
    $region45: #{se_forward.1} parent=5 // pred_check
      %p427 = pneg %p426
    $region46: #{se_forward.1} parent=5 // pred_check_branch
      %429 = sbr.rel (%p427) target = $region48
    $region47: #{se_forward.1} parent=5 // pred_region
      %s430 = ssub.s32 %s11, 2
      // Predicated region
      $region49: #{se_forward.1} parent=47 // pred_check
        %p431 = pneg %p150
      $region50: #{se_forward.1} parent=47 // pred_check_branch
        %433 = sbr.rel (%p431) target = $region52
      $region51: #{se_forward.1} parent=47 // pred_region
        %p434 = scmp.lt.s32.totalorder %s17, 1
        %s435 = scalar_select %p434, %s17, 1
        %s436 = smul.addr %s435, 2
        %s437 = smul.addr %s436, 8
        %s438 = scalar_lea.vmem %s5, %s437
      $region52: #{se_forward.1} parent=47 // pred_fallthru
        _
    $region48: #{se_forward.1} parent=5 // pred_fallthru
      _
  $region6: #{se_forward.1} parent=0 // loop_footer
    %s15 = sadd.s32 1, %s11
  $region7: #{se_forward.1} parent=0 // loop_footer_branch
    %10 = sbr.rel target = $region3
  $region8: #{se_forward.1} parent=0 // loop_exit
    _

</llo_original>
